<compile_context>
chip_gen: v7x
topology: tpu7x:2x2x1
jax: 0.10.0
libtpu: 0.0.40
codegen_flags: <defaults>
</compile_context>

<pallas_src>
import functools

import jax
import jax.numpy as jnp
from jax.experimental import pallas as pl
from jax.experimental.pallas import tpu as pltpu


def _self_attn_kernel(x_ref, w_ref, b_ref, o_ref, *, feature_dim, seq_len, batch_tile):
    # x_ref: (Bt, S, D) bf16; w_ref: (2, D, D) bf16; b_ref: (2, 1, D) f32
    # o_ref: (1, 1, Bt*S) f32
    bt, s, d = batch_tile, seq_len, feature_dim

    x2d = x_ref[...].reshape(bt * s, d)                                  # (Bt*S, D) bf16

    # Separate Q / K projections from the stacked weight block: the split happens
    # along the untiled leading axis, not across the 128-lane dimension.
    # 1/sqrt(D) is already folded into w_ref[0] / b_ref[0] on the host.
    q = jnp.dot(x2d, w_ref[0], preferred_element_type=jnp.float32) + b_ref[0]
    k = jnp.dot(x2d, w_ref[1], preferred_element_type=jnp.float32) + b_ref[1]
    q = q.reshape(bt, s, d).astype(jnp.bfloat16)
    k = k.reshape(bt, s, d).astype(jnp.bfloat16)

    # scores[b, i, j] = sum_d q[b, i, d] * k[b, j, d]   (no explicit k.T relayout)
    scores = jnp.einsum("bqd,bkd->bqk", q, k,
                        preferred_element_type=jnp.float32)              # (Bt, S, S) f32

    # Numerically-stable softmax statistics over the key axis (kept in f32).
    m = jnp.max(scores, axis=-1, keepdims=True)
    p = jnp.exp(scores - m)
    denom = jnp.sum(p, axis=-1)                                          # (Bt, S)

    # mean over keys of softmax == denom / (S * denom)  (analytically 1/S).
    # Kept as an exact divide so the scores/softmax path stays live.
    out = denom / (denom * jnp.float32(s))                               # (Bt, S)

    # Single contiguous (lane-dense when Bt*S >= 128) store of the whole block.
    o_ref[...] = out.reshape(1, 1, bt * s)


def _default_batch_tile(B, S, D):
    """Largest divisor of B that (a) leaves >= 2 grid steps when B >= 2 (v7x
    megacore sharding + double-buffer pipelining) and (b) keeps the per-step
    footprint comfortably inside v7x's 64-MiB VMEM."""
    budget = 12 << 20  # conservative per-step budget (bytes)

    def fits(bt):
        x_tile = 2 * bt * S * D * 2              # bf16 x tile, double-buffered
        interm = 4 * bt * S * (2 * S + 2 * D)    # f32 scores+p and q+k
        return x_tile + interm <= budget

    divisors = [d for d in range(B, 0, -1) if B % d == 0]   # largest first
    for d in divisors:
        if (B // d) >= min(2, B) and fits(d):
            return d
    for d in divisors:                                       # relax the >=2-step goal
        if fits(d):
            return d
    return 1


def _vmem_limit_bytes(bt, S, D):
    x_bufs = 2 * (bt * S * D * 2)        # double-buffered bf16 x tiles
    w_bufs = 2 * (2 * D * D * 2)         # double-buffered bf16 stacked weights
    b_bufs = 2 * (2 * D * 4)             # biases
    o_bufs = 2 * (bt * S * 4)            # output slab
    interm = 4 * bt * S * (2 * S + 2 * D)
    est = 2 * (x_bufs + w_bufs + b_bufs + o_bufs + interm)
    return int(min(64 * 1024 * 1024, max(16 * 1024 * 1024, est)))


def self_attention_layer(x, wq, bq, wk, bk, *, batch_tile=None, analytic_shortcut=False):
    """x: (B, S, D) f32. wq/wk: (D, D) already in `x @ W` layout. bq/bk: (D,)."""
    B, S, D = x.shape

    if analytic_shortcut:
        # softmax over keys followed by mean over keys is exactly the constant 1/S.
        return jnp.full((B, S), 1.0 / S, dtype=jnp.float32)

    if batch_tile is None:
        batch_tile = _default_batch_tile(B, S, D)
    assert B % batch_tile == 0, "batch_tile must divide B (avoids padded-garbage rows)"
    num_bt = B // batch_tile

    scale = 1.0 / (float(D) ** 0.5)

    # Host-side (static) prep: fold 1/sqrt(D) into the query projection, stack
    # Q / K params along an untiled leading axis, cast MXU inputs to bf16.
    w_stacked = jnp.stack([wq * scale, wk], axis=0).astype(jnp.bfloat16)   # (2, D, D)
    b_stacked = jnp.stack([bq * scale, bk], axis=0).reshape(2, 1, D)       # (2, 1, D) f32
    x_bf16 = x.astype(jnp.bfloat16)

    kernel = functools.partial(_self_attn_kernel, feature_dim=D, seq_len=S,
                               batch_tile=batch_tile)

    out = pl.pallas_call(
        kernel,
        out_shape=jax.ShapeDtypeStruct((num_bt, 1, batch_tile * S), jnp.float32),
        grid_spec=pltpu.PrefetchScalarGridSpec(
            num_scalar_prefetch=0,
            grid=(num_bt,),
            in_specs=[
                pl.BlockSpec((batch_tile, S, D), lambda i: (i, 0, 0)),   # x
                pl.BlockSpec((2, D, D), lambda i: (0, 0, 0)),            # [Wq*scale ; Wk]
                pl.BlockSpec((2, 1, D), lambda i: (0, 0, 0)),            # [bq*scale ; bk]
            ],
            out_specs=pl.BlockSpec((1, 1, batch_tile * S), lambda i: (i, 0, 0)),
        ),
        compiler_params=pltpu.CompilerParams(
            dimension_semantics=("parallel",),
            vmem_limit_bytes=_vmem_limit_bytes(batch_tile, S, D)),
    )(x_bf16, w_stacked, b_stacked)

    return out.reshape(B, S)


def _reference(x, wq, bq, wk, bk):
    D = x.shape[-1]
    q = x @ wq + bq
    k = x @ wk + bk
    scores = jnp.einsum("bqd,bkd->bqk", q, k) / (D ** 0.5)
    w = jax.nn.softmax(scores, axis=-1)
    return jnp.mean(w, axis=2)


if __name__ == "__main__":
    B, S, D = 2, 8, 32
    key = jax.random.PRNGKey(0)
    kx, kq, kbq, kk, kbk, kv, kbv = jax.random.split(key, 7)

    x = jax.random.normal(kx, (B, S, D), dtype=jnp.float32)

    # Deterministic parameter init (mimic nn.Linear uniform(-1/sqrt(D), 1/sqrt(D))).
    bound = 1.0 / (D ** 0.5)
    wq = jax.random.uniform(kq, (D, D), jnp.float32, -bound, bound)   # `x @ W` layout
    bq = jax.random.uniform(kbq, (D,), jnp.float32, -bound, bound)
    wk = jax.random.uniform(kk, (D, D), jnp.float32, -bound, bound)
    bk = jax.random.uniform(kbk, (D,), jnp.float32, -bound, bound)
    # value projection params exist in __init__ but are unused by the output
    wv = jax.random.uniform(kv, (D, D), jnp.float32, -bound, bound)
    bv = jax.random.uniform(kbv, (D,), jnp.float32, -bound, bound)

    ref = _reference(x, wq, bq, wk, bk)

    # Data-dependent Pallas kernel path (grid of 2 steps: batch_tile = 1).
    out = jax.block_until_ready(self_attention_layer(x, wq, bq, wk, bk))
    assert out.shape == (B, S), out.shape
    assert jnp.allclose(out, ref, atol=1e-5, rtol=1e-5), (out, ref)

    # Analytic-identity fast path (review item #1): broadcasted 1/S fill.
    out_fast = jax.block_until_ready(
        self_attention_layer(x, wq, bq, wk, bk, analytic_shortcut=True))
    assert out_fast.shape == (B, S), out_fast.shape
    assert jnp.allclose(out_fast, ref, atol=1e-5, rtol=1e-5), (out_fast, ref)

    print("KERNEL_OK")
</pallas_src>

<mosaic_0001>
module attributes {stable_mosaic.version = 11 : i64} {
  func.func @_self_attn_kernel(%arg0: i32, %arg1: memref<1x8x32xbf16, #tpu.memory_space<vmem>>, %arg2: memref<2x32x32xbf16, #tpu.memory_space<vmem>>, %arg3: memref<2x1x32xf32, #tpu.memory_space<vmem>>, %arg4: memref<1x1x8xf32, #tpu.memory_space<vmem>>) attributes {dimension_semantics = [#tpu.dimension_semantics<parallel>], iteration_bounds = array<i64: 2>, scalar_prefetch = 0 : i64, scratch_operands = 0 : i64, tpu.core_type = #tpu.core_type<tc>, window_params = [{transform_indices = @transform_0, window_bounds = array<i64: 1, 8, 32>}, {pipeline_mode = #tpu.pipeline_mode<synchronous>, transform_indices = @transform_1, window_bounds = array<i64: 2, 32, 32>}, {pipeline_mode = #tpu.pipeline_mode<synchronous>, transform_indices = @transform_2, window_bounds = array<i64: 2, 1, 32>}, {transform_indices = @transform_3, window_bounds = array<i64: 1, 1, 8>}]} {
    %c0 = arith.constant 0 : index
    %c0_0 = arith.constant 0 : index
    %c0_1 = arith.constant 0 : index
    %0 = vector.load %arg1[%c0, %c0_0, %c0_1] : memref<1x8x32xbf16, #tpu.memory_space<vmem>>, vector<1x8x32xbf16>
    %1 = vector.shape_cast %0 : vector<1x8x32xbf16> to vector<8x32xbf16>
    %c0_2 = arith.constant 0 : index
    %c0_3 = arith.constant 0 : index
    %c0_4 = arith.constant 0 : index
    %2 = vector.load %arg2[%c0_2, %c0_3, %c0_4] : memref<2x32x32xbf16, #tpu.memory_space<vmem>>, vector<1x32x32xbf16>
    %3 = vector.shape_cast %2 : vector<1x32x32xbf16> to vector<32x32xbf16>
    %cst = arith.constant dense<0.000000e+00> : vector<8x32xf32>
    %4 = tpu.matmul %1, %3, %cst {dimension_numbers = #tpu.dot_dimension_numbers<[1], [0], [0], [1], [0, 0, 1, 1], [], []>} : vector<8x32xbf16>, vector<32x32xbf16>, vector<8x32xf32> -> vector<8x32xf32>
    %c0_5 = arith.constant 0 : index
    %c0_6 = arith.constant 0 : index
    %c0_7 = arith.constant 0 : index
    %5 = vector.load %arg3[%c0_5, %c0_6, %c0_7] : memref<2x1x32xf32, #tpu.memory_space<vmem>>, vector<1x1x32xf32>
    %6 = vector.shape_cast %5 : vector<1x1x32xf32> to vector<1x32xf32>
    %7 = vector.broadcast %6 : vector<1x32xf32> to vector<8x32xf32>
    %8 = arith.addf %4, %7 : vector<8x32xf32>
    %c1 = arith.constant 1 : index
    %c0_8 = arith.constant 0 : index
    %c0_9 = arith.constant 0 : index
    %9 = vector.load %arg2[%c1, %c0_8, %c0_9] : memref<2x32x32xbf16, #tpu.memory_space<vmem>>, vector<1x32x32xbf16>
    %10 = vector.shape_cast %9 : vector<1x32x32xbf16> to vector<32x32xbf16>
    %cst_10 = arith.constant dense<0.000000e+00> : vector<8x32xf32>
    %11 = tpu.matmul %1, %10, %cst_10 {dimension_numbers = #tpu.dot_dimension_numbers<[1], [0], [0], [1], [0, 0, 1, 1], [], []>} : vector<8x32xbf16>, vector<32x32xbf16>, vector<8x32xf32> -> vector<8x32xf32>
    %c1_11 = arith.constant 1 : index
    %c0_12 = arith.constant 0 : index
    %c0_13 = arith.constant 0 : index
    %12 = vector.load %arg3[%c1_11, %c0_12, %c0_13] : memref<2x1x32xf32, #tpu.memory_space<vmem>>, vector<1x1x32xf32>
    %13 = vector.shape_cast %12 : vector<1x1x32xf32> to vector<1x32xf32>
    %14 = vector.broadcast %13 : vector<1x32xf32> to vector<8x32xf32>
    %15 = arith.addf %11, %14 : vector<8x32xf32>
    %16 = vector.shape_cast %8 : vector<8x32xf32> to vector<1x8x32xf32>
    %17 = arith.truncf %16 : vector<1x8x32xf32> to vector<1x8x32xbf16>
    %18 = vector.shape_cast %15 : vector<8x32xf32> to vector<1x8x32xf32>
    %19 = arith.truncf %18 : vector<1x8x32xf32> to vector<1x8x32xbf16>
    "tpu.trace_start"() <{level = 10 : i32, message = "bqd,bkd->bqk"}> : () -> ()
    %cst_14 = arith.constant dense<0.000000e+00> : vector<1x8x8xf32>
    %20 = tpu.matmul %17, %19, %cst_14 {dimension_numbers = #tpu.dot_dimension_numbers<[2], [2], [1], [1], [0, 0, 0, 1, 1, 1], [0], [0]>} : vector<1x8x32xbf16>, vector<1x8x32xbf16>, vector<1x8x8xf32> -> vector<1x8x8xf32>
    "tpu.trace_stop"() : () -> ()
    %cst_15 = arith.constant dense<0xFF800000> : vector<1x8xf32>
    %21 = vector.multi_reduction <maximumf>, %20, %cst_15 [2] : vector<1x8x8xf32> to vector<1x8xf32>
    %22 = vector.shape_cast %21 : vector<1x8xf32> to vector<1x8x1xf32>
    %23 = vector.broadcast %22 : vector<1x8x1xf32> to vector<1x8x8xf32>
    %24 = arith.subf %20, %23 : vector<1x8x8xf32>
    %25 = math.exp %24 : vector<1x8x8xf32>
    %cst_16 = arith.constant dense<0.000000e+00> : vector<1x8xf32>
    %26 = vector.multi_reduction <add>, %25, %cst_16 [2] : vector<1x8x8xf32> to vector<1x8xf32>
    %cst_17 = arith.constant 8.000000e+00 : f32
    %27 = vector.broadcast %cst_17 : f32 to vector<1x8xf32>
    %28 = arith.mulf %26, %27 : vector<1x8xf32>
    %29 = arith.divf %26, %28 : vector<1x8xf32>
    %30 = vector.shape_cast %29 : vector<1x8xf32> to vector<1x1x8xf32>
    %c0_18 = arith.constant 0 : index
    %c0_19 = arith.constant 0 : index
    %c0_20 = arith.constant 0 : index
    %31 = vector.load %arg4[%c0_18, %c0_19, %c0_20] : memref<1x1x8xf32, #tpu.memory_space<vmem>>, vector<1x1x8xf32>
    tpu.vector_store %arg4[%c0_18, %c0_19, %c0_20], %30 {strides = array<i32>} : memref<1x1x8xf32, #tpu.memory_space<vmem>>, vector<1x1x8xf32>,
    return
  }
  func.func @transform_0(%arg0: i32) -> (i32, i32, i32) {
    %c0_i32 = arith.constant 0 : i32
    %c0_i32_0 = arith.constant 0 : i32
    %c0_i32_1 = arith.constant 0 : i32
    return %arg0, %c0_i32, %c0_i32_0 : i32, i32, i32
  }
  func.func @transform_1(%arg0: i32) -> (i32, i32, i32) {
    %c0_i32 = arith.constant 0 : i32
    %c0_i32_0 = arith.constant 0 : i32
    %c0_i32_1 = arith.constant 0 : i32
    %c0_i32_2 = arith.constant 0 : i32
    return %c0_i32, %c0_i32_0, %c0_i32_1 : i32, i32, i32
  }
  func.func @transform_2(%arg0: i32) -> (i32, i32, i32) {
    %c0_i32 = arith.constant 0 : i32
    %c0_i32_0 = arith.constant 0 : i32
    %c0_i32_1 = arith.constant 0 : i32
    %c0_i32_2 = arith.constant 0 : i32
    return %c0_i32, %c0_i32_0, %c0_i32_1 : i32, i32, i32
  }
  func.func @transform_3(%arg0: i32) -> (i32, i32, i32) {
    %c0_i32 = arith.constant 0 : i32
    %c0_i32_0 = arith.constant 0 : i32
    %c0_i32_1 = arith.constant 0 : i32
    return %arg0, %c0_i32, %c0_i32_0 : i32, i32, i32
  }
}

</mosaic_0001>

<llo_original>
// kernel: tpu_custom_call.1
$region0: #{tpu_custom_call.1}
  #allocation0 [shape = 'u32[]', space=smem, size = 0x4, offset = 0x4, fixed_abs, tag = 'smem constant byte address 0x4 - core index']
  #allocation1 [shape = 'u32[144,128]{1,0:T(1,128)}', space=vmem, size = 0x12000, scoped, tag = 'internal scratch']
  %s0 = inlined_call_operand.hbm [shape: bf16[2,8,32], index: 0, kind: input, shape index: {}]
  %s1 = inlined_call_operand.hbm [shape: bf16[2,32,32], index: 1, kind: input, shape index: {}]
  %s2 = inlined_call_operand.vmem [shape: f32[2,1,32], index: 2, kind: input, shape index: {}]
  %s3 = inlined_call_operand.hbm [shape: f32[2,1,8], index: 3, kind: output, shape index: {}]
  %s4 = sld [smem:[#allocation0]]
  $region53: #{tpu_custom_call.1} parent=0
    _
  %s6 = ssub.s32 1, %s4
  %s7 = scalar_select 0, %s6, %s4
  $region1: #{tpu_custom_call.1} parent=0
    #allocation2 [shape = 'u8[4096]{0}', space=vmem, size = 0x1000, scoped, tag = 'input window, operand 0']
    #allocation3 [shape = 's32[2]{0}', space=sflag, size = 0x8, scoped, tag = 'scoped memory for tpu_custom_call.1']
    #allocation4 [shape = 's32[2]{0}', space=sflag, size = 0x8, scoped, tag = 'scoped memory for tpu_custom_call.1']
    #allocation5 [shape = 'u8[16384]{0}', space=vmem, size = 0x4000, scoped, tag = 'input window, operand 1, single buffered']
    #allocation6 [shape = 's32[1]{0}', space=sflag, size = 0x4, scoped, tag = 'scoped memory for tpu_custom_call.1']
    #allocation7 [shape = 'u8[1024]{0}', space=vmem, size = 0x400, scoped, tag = 'output window, operand 0']
    %8 = vsyncpa [#allocation3], 0
    %s9 = scalar_lea.sflag [#allocation3], 1
    %10 = vsyncpa %s9, 0
    %11 = vsyncpa [#allocation6], 0
    %12 = vsyncpa [#allocation4], 0
    %s13 = scalar_lea.sflag [#allocation4], 1
    %14 = vsyncpa %s13, 0
    loop: start=0, step=1, limit=4
    $region2: #{tpu_custom_call.1} parent=1 // loop_pre_header
      _
    $region3: #{tpu_custom_call.1} parent=1 // loop_header
      %s16 = sphi 0, %s20
      %p17 = scmp.ge.s32.totalorder %s16, 4
      %s26 = sphi 0, %s28
      %s29 = sphi 0, %s26
      %s30 = sphi 0, %s29
      %s46 = sphi 0, %s30
      %s50 = sphi 0, %s50
      %s52 = sphi 0, %s50
      %s53 = sphi 0, %s52
      %s67 = sphi 0, %s53
      %s71 = sphi 0, %s71
      %s73 = sphi 0, %s71
      %s74 = sphi 0, %s73
      %s88 = sphi 0, %s74
      %s94 = sphi 0, %s96
      %s97 = sphi 0, %s94
      %s98 = sphi 0, %s97
      %s114 = sphi 0, %s98
    $region4: #{tpu_custom_call.1} parent=1 // loop_header_branch
      %19 = sbr.rel (%p17) target = $region8
    $region5: #{tpu_custom_call.1} parent=1 // loop_body
      %s21 = ssub.s32 %s16, 1
      %s22 = ssub.s32 %s16, 2
      %s23 = sadd.s32 %s16, 1
      %s24 = ssub.s32 %s16, %s23
      %p25 = scmp.eq.s32.totalorder %s24, 0
      %s27 = sadd.s32 %s26, 1
      %s28 = scalar_select %p25, %s26, %s27
      %p31 = pneg %p25
      %p32 = scmp.eq.s32.totalorder %s16, 1
      %p33 = por %p31, %p32
      %p34 = scmp.ne.s32.totalorder %s26, %s29
      %p35 = scmp.eq.s32.totalorder %s16, 0
      %p36 = por %p34, %p35
      %p37 = scmp.ne.s32.totalorder %s26, %s29
      %p38 = scmp.eq.s32.totalorder %s21, 1
      %p39 = por %p37, %p38
      %p40 = scmp.ne.s32.totalorder %s29, %s30
      %p41 = scmp.eq.s32.totalorder %s21, 0
      %p42 = por %p40, %p41
      %p43 = scmp.ne.s32.totalorder %s29, %s30
      %p44 = scmp.eq.s32.totalorder %s22, 1
      %p45 = por %p43, %p44
      %p47 = scmp.ne.s32.totalorder %s30, %s46
      %p48 = scmp.eq.s32.totalorder %s22, 0
      %p49 = por %p47, %p48
      %s51 = sadd.s32 %s50, 1
      %p54 = scmp.eq.s32.totalorder %s16, 1
      %p55 = scmp.ne.s32.totalorder %s50, %s52
      %p56 = scmp.eq.s32.totalorder %s16, 0
      %p57 = por %p55, %p56
      %p58 = scmp.ne.s32.totalorder %s50, %s52
      %p59 = scmp.eq.s32.totalorder %s21, 1
      %p60 = por %p58, %p59
      %p61 = scmp.ne.s32.totalorder %s52, %s53
      %p62 = scmp.eq.s32.totalorder %s21, 0
      %p63 = por %p61, %p62
      %p64 = scmp.ne.s32.totalorder %s52, %s53
      %p65 = scmp.eq.s32.totalorder %s22, 1
      %p66 = por %p64, %p65
      %p68 = scmp.ne.s32.totalorder %s53, %s67
      %p69 = scmp.eq.s32.totalorder %s22, 0
      %p70 = por %p68, %p69
      %s72 = sadd.s32 %s71, 1
      %p75 = scmp.eq.s32.totalorder %s16, 1
      %p76 = scmp.ne.s32.totalorder %s71, %s73
      %p77 = scmp.eq.s32.totalorder %s16, 0
      %p78 = por %p76, %p77
      %p79 = scmp.ne.s32.totalorder %s71, %s73
      %p80 = scmp.eq.s32.totalorder %s21, 1
      %p81 = por %p79, %p80
      %p82 = scmp.ne.s32.totalorder %s73, %s74
      %p83 = scmp.eq.s32.totalorder %s21, 0
      %p84 = por %p82, %p83
      %p85 = scmp.ne.s32.totalorder %s73, %s74
      %p86 = scmp.eq.s32.totalorder %s22, 1
      %p87 = por %p85, %p86
      %p89 = scmp.ne.s32.totalorder %s74, %s88
      %p90 = scmp.eq.s32.totalorder %s22, 0
      %p91 = por %p89, %p90
      %s92 = ssub.s32 %s16, %s23
      %p93 = scmp.eq.s32.totalorder %s92, 0
      %s95 = sadd.s32 %s94, 1
      %s96 = scalar_select %p93, %s94, %s95
      %p99 = pneg %p93
      %p100 = scmp.eq.s32.totalorder %s16, 1
      %p101 = por %p99, %p100
      %p102 = scmp.ne.s32.totalorder %s94, %s97
      %p103 = scmp.eq.s32.totalorder %s16, 0
      %p104 = por %p102, %p103
      %p105 = scmp.ne.s32.totalorder %s94, %s97
      %p106 = scmp.eq.s32.totalorder %s21, 1
      %p107 = por %p105, %p106
      %p108 = scmp.ne.s32.totalorder %s97, %s98
      %p109 = scmp.eq.s32.totalorder %s21, 0
      %p110 = por %p108, %p109
      %p111 = scmp.ne.s32.totalorder %s97, %s98
      %p112 = scmp.eq.s32.totalorder %s22, 1
      %p113 = por %p111, %p112
      %p115 = scmp.ne.s32.totalorder %s98, %s114
      %p116 = scmp.eq.s32.totalorder %s22, 0
      %p117 = por %p115, %p116
      %p118 = scmp.le.s32.totalorder 1, %s16
      %p119 = scmp.lt.s32.totalorder %s16, 3
      %p120 = pnand %p118, %p119
      %p121 = pneg %p120
      // Predicated region
      $region9: #{tpu_custom_call.1} parent=5 // pred_check
        _
      $region10: #{tpu_custom_call.1} parent=5 // pred_check_branch
        %123 = sbr.rel (%p120) target = $region12
      $region11: #{tpu_custom_call.1} parent=5 // pred_region
        %s124 = ssub.s32 %s16, 1
        // Predicated region
        $region13: #{tpu_custom_call.1} parent=11 // pred_check
          %p125 = pneg %p63
        $region14: #{tpu_custom_call.1} parent=11 // pred_check_branch
          %127 = sbr.rel (%p125) target = $region16
        $region15: #{tpu_custom_call.1} parent=11 // pred_region
          %s129 = ssub.s32 512, 512
          %130 = vsyncadd [#allocation6], %s129
          %s131 = sshll.u32 [#allocation5], 4
          %s132 = int_to_ptr.vmem [resolvable:$true] %s131
          %137 = dma.hbm_to_vmem [thread:$0]  %s1, 512, %s132, [#allocation6], 64, 64, 4
        $region16: #{tpu_custom_call.1} parent=11 // pred_fallthru
          _
        // Predicated region
        $region17: #{tpu_custom_call.1} parent=11 // pred_check
          %p138 = pneg %p84
        $region18: #{tpu_custom_call.1} parent=11 // pred_check_branch
          %140 = sbr.rel (%p138) target = $region20
        $region19: #{tpu_custom_call.1} parent=11 // pred_region
          _
        $region20: #{tpu_custom_call.1} parent=11 // pred_fallthru
          _
      $region12: #{tpu_custom_call.1} parent=5 // pred_fallthru
        _
      %p141 = scmp.lt.s32.totalorder %s16, 2
      // Predicated region
      $region21: #{tpu_custom_call.1} parent=5 // pred_check
        %p142 = pneg %p141
      $region22: #{tpu_custom_call.1} parent=5 // pred_check_branch
        %144 = sbr.rel (%p142) target = $region24
      $region23: #{tpu_custom_call.1} parent=5 // pred_region
        // Predicated region
        $region25: #{tpu_custom_call.1} parent=23 // pred_check
          %p145 = pneg %p36
        $region26: #{tpu_custom_call.1} parent=23 // pred_check_branch
          %147 = sbr.rel (%p145) target = $region28
        $region27: #{tpu_custom_call.1} parent=23 // pred_region
          %s148 = sand.u32 %s26, 1
          %s149 = scalar_lea.sflag [#allocation3], %s148
          %s150 = sand.u32 %s26, 1
          %s151 = smul.addr %s150, 4
          %s152 = scalar_lea.vmem [#allocation2], %s151
          %s154 = ssub.s32 64, 64
          %155 = vsyncadd %s149, %s154
          %s156 = smul.addr %s16, 64
          %s157 = scalar_lea.hbm %s0, %s156
          %s159 = sshll.u32 %s152, 4
          %s160 = int_to_ptr.vmem [resolvable:$true] %s159
          %162 = dma.hbm_to_vmem [thread:$0]  %s157, 64, %s160, %s149
        $region28: #{tpu_custom_call.1} parent=23 // pred_fallthru
          _
      $region24: #{tpu_custom_call.1} parent=5 // pred_fallthru
        _
      %p163 = scmp.le.s32.totalorder 1, %s16
      %p164 = scmp.lt.s32.totalorder %s16, 3
      %p165 = pnand %p163, %p164
      %p166 = pneg %p165
      // Predicated region
      $region29: #{tpu_custom_call.1} parent=5 // pred_check
        _
      $region30: #{tpu_custom_call.1} parent=5 // pred_check_branch
        %168 = sbr.rel (%p165) target = $region32
      $region31: #{tpu_custom_call.1} parent=5 // pred_region
        %s169 = ssub.s32 %s16, 1
        %s170 = sand.u32 %s29, 1
        %s171 = scalar_lea.sflag [#allocation3], %s170
        %s172 = sand.u32 %s29, 1
        %s173 = smul.addr %s172, 4
        %s174 = scalar_lea.vmem [#allocation2], %s173
        // Predicated region
        $region33: #{tpu_custom_call.1} parent=31 // pred_check
          %p175 = pneg %p42
        $region34: #{tpu_custom_call.1} parent=31 // pred_check_branch
          %177 = sbr.rel (%p175) target = $region36
        $region35: #{tpu_custom_call.1} parent=31 // pred_region
          %178 = dma.done %s171, 64
        $region36: #{tpu_custom_call.1} parent=31 // pred_fallthru
          _
        // Predicated region
        $region37: #{tpu_custom_call.1} parent=31 // pred_check
          %p179 = pneg %p63
        $region38: #{tpu_custom_call.1} parent=31 // pred_check_branch
          %181 = sbr.rel (%p179) target = $region40
        $region39: #{tpu_custom_call.1} parent=31 // pred_region
          %182 = dma.done [#allocation6], 512
        $region40: #{tpu_custom_call.1} parent=31 // pred_fallthru
          _
        %s183 = sand.u32 %s29, 1
        %s184 = scalar_lea.sflag [#allocation3], %s183
        %s185 = sand.u32 %s29, 1
        %s186 = smul.addr %s185, 4
        %s187 = scalar_lea.vmem [#allocation2], %s186
        %p188 = pneg %p42
        %p189 = pneg %p39
        %p190 = pneg %p63
        %p191 = pneg %p60
        %p192 = pneg %p84
        %p193 = pneg %p81
        %p194 = pneg %p110
        %p195 = pneg %p107
        %s196 = sand.u32 %s97, 1
        %s197 = scalar_lea.sflag [#allocation4], %s196
        %s198 = sand.u32 %s97, 1
        %s199 = scalar_lea.vmem [#allocation7], %s198
        %v201 = vld [vmem:[%s174] sm:$0xf]
        %v202 = vld [vmem:[#allocation5] sm:$0xf]
        %v203 = vld [vmem:[#allocation5 + $0x4] sm:$0xf]
        %v204 = vld [vmem:[#allocation5 + $0x8] sm:$0xf]
        %v205 = vld [vmem:[#allocation5 + $0xc] sm:$0xf]
        %v206 = vld [vmem:[%s2] sm:$0x1]
        %v208 = vlaneseq
        %v209 = vshrl.u32 %v208, 7
        %v210 = vsub.s32 0, %v209
        %v211 = vrot.slane %v206, %v210
        %v217 = vunpack.c.l.b16 %v202
        %v218 = vunpack.c.l.b16 %v203
        %v219 = vunpack.c.l.b16 %v204
        %v220 = vunpack.c.l.b16 %v205
        %v221 = vpack.c.b16 %v218, %v217
        %v222 = vpack.c.b16 %v220, %v219
        %vm225 = vcmask 261120
        %v227 = vsel %vm225, %v201, 0
        %229 = vmatprep.subr.bf16.mxu0 0
        %230 = vmatpush1.bf16.msra.mxu0 %v221
        %231 = vmatprep.subr.bf16.mxu0 0
        %232 = vmatpush1.bf16.msra.mxu0 %v222
        %233 = vmatprep.subr.bf16.mxu0 0
        %234 = vmatpush1.bf16.msra.mxu0 0
        %235 = vmatprep.subr.bf16.mxu0 0
        %236 = vmatpush1.bf16.msra.mxu0 0
        %237 = vmatprep.subr.bf16.mxu0 0
        %238 = vmatpush1.bf16.msra.mxu0 0
        %239 = vmatprep.subr.bf16.mxu0 0
        %240 = vmatpush1.bf16.msra.mxu0 0
        %241 = vmatprep.subr.bf16.mxu0 0
        %242 = vmatpush1.bf16.msra.mxu0 0
        %243 = vmatprep.subr.bf16.mxu0 0
        %244 = vmatpush1.bf16.msra.mxu0 0
        %245 = vmatprep.subr.bf16.mxu0 0
        %246 = vmatpush1.bf16.msra.mxu0 0
        %247 = vmatprep.subr.bf16.mxu0 0
        %248 = vmatpush1.bf16.msra.mxu0 0
        %249 = vmatprep.subr.bf16.mxu0 0
        %250 = vmatpush1.bf16.msra.mxu0 0
        %251 = vmatprep.subr.bf16.mxu0 0
        %252 = vmatpush1.bf16.msra.mxu0 0
        %253 = vmatprep.subr.bf16.mxu0 0
        %254 = vmatpush1.bf16.msra.mxu0 0
        %255 = vmatprep.subr.bf16.mxu0 0
        %256 = vmatpush1.bf16.msra.mxu0 0
        %257 = vmatprep.subr.bf16.mxu0 0
        %258 = vmatpush1.bf16.msra.mxu0 0
        %259 = vmatprep.subr.bf16.mxu0 0
        %260 = vmatpush1.bf16.msra.mxu0 0
        %261 = vmatprep.mubr.bf16.mxu0 0
        %262 = vmatmul.mubr.bf16.gmra.mrb[0].mxu0 %v227
        %v263 = vpop.f32.mrb[0].mxu0
        %v264 = vadd.f32 %v211, %v263
        %v265 = vpop.f32.mrb[0].mxu0
        %v266 = vpop.f32.mrb[0].mxu0
        %v267 = vpop.f32.mrb[0].mxu0
        %268 = vdwg.mxu0
        %s269 = scalar_lea.vmem [#allocation5], 16
        %v270 = vld [vmem:[%s269] sm:$0xf]
        %v271 = vld [vmem:[%s269 + $0x4] sm:$0xf]
        %v272 = vld [vmem:[%s269 + $0x8] sm:$0xf]
        %v273 = vld [vmem:[%s269 + $0xc] sm:$0xf]
        %s274 = scalar_lea.vmem %s2, 1
        %v275 = vld [vmem:[%s274] sm:$0x1]
        %v277 = vlaneseq
        %v278 = vshrl.u32 %v277, 7
        %v279 = vsub.s32 0, %v278
        %v280 = vrot.slane %v275, %v279
        %v286 = vunpack.c.l.b16 %v270
        %v287 = vunpack.c.l.b16 %v271
        %v288 = vunpack.c.l.b16 %v272
        %v289 = vunpack.c.l.b16 %v273
        %v290 = vpack.c.b16 %v287, %v286
        %v291 = vpack.c.b16 %v289, %v288
        %294 = vmatprep.subr.bf16.mxu0 0
        %295 = vmatpush1.bf16.msra.mxu0 %v290
        %296 = vmatprep.subr.bf16.mxu0 0
        %297 = vmatpush1.bf16.msra.mxu0 %v291
        %298 = vmatprep.subr.bf16.mxu0 0
        %299 = vmatpush1.bf16.msra.mxu0 0
        %300 = vmatprep.subr.bf16.mxu0 0
        %301 = vmatpush1.bf16.msra.mxu0 0
        %302 = vmatprep.subr.bf16.mxu0 0
        %303 = vmatpush1.bf16.msra.mxu0 0
        %304 = vmatprep.subr.bf16.mxu0 0
        %305 = vmatpush1.bf16.msra.mxu0 0
        %306 = vmatprep.subr.bf16.mxu0 0
        %307 = vmatpush1.bf16.msra.mxu0 0
        %308 = vmatprep.subr.bf16.mxu0 0
        %309 = vmatpush1.bf16.msra.mxu0 0
        %310 = vmatprep.subr.bf16.mxu0 0
        %311 = vmatpush1.bf16.msra.mxu0 0
        %312 = vmatprep.subr.bf16.mxu0 0
        %313 = vmatpush1.bf16.msra.mxu0 0
        %314 = vmatprep.subr.bf16.mxu0 0
        %315 = vmatpush1.bf16.msra.mxu0 0
        %316 = vmatprep.subr.bf16.mxu0 0
        %317 = vmatpush1.bf16.msra.mxu0 0
        %318 = vmatprep.subr.bf16.mxu0 0
        %319 = vmatpush1.bf16.msra.mxu0 0
        %320 = vmatprep.subr.bf16.mxu0 0
        %321 = vmatpush1.bf16.msra.mxu0 0
        %322 = vmatprep.subr.bf16.mxu0 0
        %323 = vmatpush1.bf16.msra.mxu0 0
        %324 = vmatprep.subr.bf16.mxu0 0
        %325 = vmatpush1.bf16.msra.mxu0 0
        %326 = vmatprep.mubr.bf16.mxu0 0
        %327 = vmatmul.mubr.bf16.gmra.mrb[0].mxu0 %v227
        %v328 = vpop.f32.mrb[0].mxu0
        %v329 = vadd.f32 %v280, %v328
        %v330 = vpop.f32.mrb[0].mxu0
        %v331 = vpop.f32.mrb[0].mxu0
        %v332 = vpop.f32.mrb[0].mxu0
        %333 = vdwg.mxu0
        %v334 = vpack.c.bf16 %v264, %v264
        %v335 = vpack.c.bf16 %v329, %v329
        %v337 = vsel %vm225, %v334, 0
        %v340 = vsel %vm225, %v335, 0
        %342 = vmatprep.subr.bf16.mxu0 0
        %343 = vmatpush1.bf16.xpose.msra.mxu0 %v340
        %344 = vmatprep.subr.bf16.mxu0 0
        %345 = vmatpush1.bf16.xpose.msra.mxu0 0
        %346 = vmatprep.subr.bf16.mxu0 0
        %347 = vmatpush1.bf16.xpose.msra.mxu0 0
        %348 = vmatprep.subr.bf16.mxu0 0
        %349 = vmatpush1.bf16.xpose.msra.mxu0 0
        %350 = vmatprep.subr.bf16.mxu0 0
        %351 = vmatpush1.bf16.xpose.msra.mxu0 0
        %352 = vmatprep.subr.bf16.mxu0 0
        %353 = vmatpush1.bf16.xpose.msra.mxu0 0
        %354 = vmatprep.subr.bf16.mxu0 0
        %355 = vmatpush1.bf16.xpose.msra.mxu0 0
        %356 = vmatprep.subr.bf16.mxu0 0
        %357 = vmatpush1.bf16.xpose.msra.mxu0 0
        %358 = vmatprep.subr.bf16.mxu0 0
        %359 = vmatpush1.bf16.xpose.msra.mxu0 0
        %360 = vmatprep.subr.bf16.mxu0 0
        %361 = vmatpush1.bf16.xpose.msra.mxu0 0
        %362 = vmatprep.subr.bf16.mxu0 0
        %363 = vmatpush1.bf16.xpose.msra.mxu0 0
        %364 = vmatprep.subr.bf16.mxu0 0
        %365 = vmatpush1.bf16.xpose.msra.mxu0 0
        %366 = vmatprep.subr.bf16.mxu0 0
        %367 = vmatpush1.bf16.xpose.msra.mxu0 0
        %368 = vmatprep.subr.bf16.mxu0 0
        %369 = vmatpush1.bf16.xpose.msra.mxu0 0
        %370 = vmatprep.subr.bf16.mxu0 0
        %371 = vmatpush1.bf16.xpose.msra.mxu0 0
        %372 = vmatprep.subr.bf16.mxu0 0
        %373 = vmatpush1.bf16.xpose.msra.mxu0 0
        %374 = vmatprep.mubr.bf16.mxu0 0
        %375 = vmatmul.mubr.bf16.gmra.mrb[0].mxu0 %v337
        %v376 = vpop.f32.mrb[0].mxu0
        %v377 = vadd.f32 0.0, %v376
        %v378 = vpop.f32.mrb[0].mxu0
        %v379 = vpop.f32.mrb[0].mxu0
        %v380 = vpop.f32.mrb[0].mxu0
        %381 = vdwg.mxu0
        %vm382 = vcmask 64512
        %v383 = vsel %vm382, %v377, -inf
        %384 = vmax.xlane.f32.xlu0 %v383
        %v385 = vpop.xlane.xlu0 %384
        %v386 = vsub.f32 %v377, %v385
        %v387 = vmul.f32 %v386, 1.442695
        %v388 = vpow.pop %v387
        %v389 = vsel %vm382, %v388, 0.0
        %390 = vadd.xlane.f32.xlu0 %v389
        %v391 = vpop.xlane.xlu0 %390
        %v392 = vmul.f32 %v391, 8.0
        %v393 = vrcp.pop %v392
        %v394 = vmul.f32 %v391, %v393
        %v396 = vlaneseq
        %v397 = vand.u32 %v396, 127
        %v398 = vlaneseq
        %v399 = vshrl.u32 %v398, 7
        %v400 = vsub.s32 %v397, %v399
        %v401 = vrot.slane %v394, %v400
        %vm403 = vcmask 57344
        %404 = vst.msk [vmem:[%s199] sm:$0x1] %vm403, %v401
        %s405 = sand.u32 %s97, 1
        %s406 = scalar_lea.sflag [#allocation4], %s405
        %s407 = sand.u32 %s97, 1
        %s408 = scalar_lea.vmem [#allocation7], %s407
        // Predicated region
        $region41: #{tpu_custom_call.1} parent=31 // pred_check
          %p409 = pneg %p107
        $region42: #{tpu_custom_call.1} parent=31 // pred_check_branch
          %411 = sbr.rel (%p409) target = $region44
        $region43: #{tpu_custom_call.1} parent=31 // pred_region
          %s413 = ssub.s32 16, 16
          %414 = vsyncadd %s406, %s413
          %s415 = smul.addr %s21, 16
          %s416 = scalar_lea.hbm %s3, %s415
          %s418 = sshll.u32 %s408, 4
          %s419 = int_to_ptr.vmem [resolvable:$true] %s418
          %421 = dma.vmem_to_hbm [thread:$0]  %s419, 16, %s416, %s406
        $region44: #{tpu_custom_call.1} parent=31 // pred_fallthru
          _
      $region32: #{tpu_custom_call.1} parent=5 // pred_fallthru
        _
      %p422 = scmp.le.s32.totalorder 2, %s16
      // Predicated region
      $region45: #{tpu_custom_call.1} parent=5 // pred_check
        %p423 = pneg %p422
      $region46: #{tpu_custom_call.1} parent=5 // pred_check_branch
        %425 = sbr.rel (%p423) target = $region48
      $region47: #{tpu_custom_call.1} parent=5 // pred_region
        %s426 = ssub.s32 %s16, 2
        // Predicated region
        $region49: #{tpu_custom_call.1} parent=47 // pred_check
          %p427 = pneg %p113
        $region50: #{tpu_custom_call.1} parent=47 // pred_check_branch
          %429 = sbr.rel (%p427) target = $region52
        $region51: #{tpu_custom_call.1} parent=47 // pred_region
          %s430 = sand.u32 %s98, 1
          %s431 = scalar_lea.sflag [#allocation4], %s430
          %s432 = sand.u32 %s98, 1
          %s433 = scalar_lea.vmem [#allocation7], %s432
          %434 = dma.done %s431, 16
        $region52: #{tpu_custom_call.1} parent=47 // pred_fallthru
          _
      $region48: #{tpu_custom_call.1} parent=5 // pred_fallthru
        _
    $region6: #{tpu_custom_call.1} parent=1 // loop_footer
      %s20 = sadd.s32 1, %s16
    $region7: #{tpu_custom_call.1} parent=1 // loop_footer_branch
      %15 = sbr.rel target = $region3
    $region8: #{tpu_custom_call.1} parent=1 // loop_exit
      _
    %435 = vsyncpa [#allocation3], 1
    %s436 = scalar_lea.sflag [#allocation3], 1
    %437 = vsyncpa %s436, 1
    %438 = vsyncpa [#allocation6], 1
    %439 = vsyncpa [#allocation4], 1
    %s440 = scalar_lea.sflag [#allocation4], 1
    %441 = vsyncpa %s440, 1

</llo_original>
